<compile_context>
chip_gen: v6e
topology: v6e:2x2x1
jax: 0.10.0
libtpu: 0.0.40
codegen_flags: <defaults>
</compile_context>

<pallas_src>
import jax
import jax.numpy as jnp
from jax.experimental import pallas as pl
from jax.experimental.pallas import tpu as pltpu


def _num_tensorcores() -> int:
    """v7x has 2 TensorCores per chip; v5e/v6e have 1.  Defaults to 1 (always safe)."""
    # Optional trace-time probe; any failure falls through to the device-kind check.
    try:
        get_info = getattr(pltpu, "get_tpu_info", None)
        if get_info is not None:
            info = get_info()
            for attr in ("num_cores", "num_tensorcores", "tensorcore_count"):
                v = getattr(info, attr, None)
                if isinstance(v, int) and v in (1, 2):
                    return v
    except Exception:
        pass
    try:
        kind = jax.devices()[0].device_kind.lower()
        if "v7" in kind or "7x" in kind:
            return 2
    except Exception:
        pass
    return 1


def _spectral_kernel(x_ref, g_ref, cb_ref, pw_ref, lb_ref, sel_ref,
                     mup_ref, mdn_ref, out_ref):
    # x_ref  : (1, Bt*H, W)      batch-tile of single-channel image rows
    # g_ref  : (3*W, W*hidden)   banded 3x3-conv weight matrix (W zero-padding folded in)
    # cb_ref : (1, W*hidden)     conv bias tiled along W
    # pw_ref : (W*hidden, n_cls) lin_w tiled along W, pre-scaled by 1/(H*W)
    # lb_ref : (1, n_cls)
    # sel_ref: (Bt, Bt*H)        per-image h-pooling selector (grid-invariant, hoisted)
    # mup_ref/mdn_ref: (Bt*H, 1) image-boundary masks for the h-1 / h+1 rows
    # out_ref: (1, Bt, n_cls)
    xr = x_ref[0]                                                    # (BtH, W)
    BtH = xr.shape[0]

    # Rows h-1 / h+1 via XLU sublane rotation + boundary masks (replaces the old
    # (BtH,BtH) selector matmuls).
    up = pltpu.roll(xr, shift=1, axis=0) * mup_ref[...]              # up[r] = xr[r-1]
    dn = pltpu.roll(xr, shift=BtH - 1, axis=0) * mdn_ref[...]        # dn[r] = xr[r+1]

    # 3x3 "same" cross-correlation as ONE fused MXU matmul: lane-pack the three
    # kernel-row operands into a (BtH, 3W) LHS and contract against the full
    # banded weight matrix.  acc[(b,h), w*hidden+j] = conv output at (b, j, h, w).
    lhs = jnp.concatenate([up, xr, dn], axis=1)                      # (BtH, 3W)
    acc = jnp.dot(lhs, g_ref[...], preferred_element_type=jnp.float32)
    acc = jnp.maximum(acc + cb_ref[0, :], 0.0)                       # bias + ReLU

    # Global average pool + Linear head fused: pw already contains lin_w/(H*W)
    # tiled along W, so pooling over w happens inside this contraction ...
    t = jnp.dot(acc, pw_ref[...], preferred_element_type=jnp.float32)   # (BtH, n_cls)
    # ... and pooling over h (per image) is the precomputed selector matmul.
    logits = jnp.dot(sel_ref[...], t, preferred_element_type=jnp.float32) + lb_ref[0, :]
    out_ref[0] = logits.astype(out_ref.dtype)


def spectral_analysis_forward(x, conv_w, conv_b, lin_w, lin_b):
    """x: (N, C, H, W) f32 -> (N, C, n_classes) f32, matching the PyTorch module."""
    N, C, H, W = x.shape
    hidden = conv_w.shape[-1]
    n_classes = lin_w.shape[-1]

    B = N * C
    ntc = _num_tensorcores()
    G = 2 if (ntc >= 2 and B % 2 == 0) else 1   # split only when there are 2 TCs (v7x)
    Bt = B // G
    BtH = Bt * H

    # ---- weight preprocessing (input independent; folds under jit with const weights) ----
    # gmat[dh*W + w', w*hidden + j] = conv_w[dh*3 + (w'-w+1), j] if |w'-w| <= 1 else 0.
    dh = jnp.arange(3)[:, None, None, None]
    wp = jnp.arange(W)[None, :, None, None]
    w_ = jnp.arange(W)[None, None, :, None]
    jj = jnp.arange(hidden)[None, None, None, :]
    dw = wp - w_ + 1
    taps = conv_w[dh * 3 + jnp.clip(dw, 0, 2), jj]                     # (3, W, W, hidden)
    gmat = jnp.where((dw >= 0) & (dw <= 2), taps, 0.0)
    gmat = gmat.reshape(3 * W, W * hidden).astype(jnp.float32)         # (3W, W*hidden)
    cb_row = jnp.tile(conv_b.reshape(1, hidden), (1, W))               # (1, W*hidden)
    pw = (jnp.tile(lin_w, (W, 1)) / float(H * W)).astype(jnp.float32)  # (W*hidden, n_cls)
    lb = lin_b.reshape(1, n_classes)

    # ---- grid-invariant kernel constants, hoisted out of the kernel body ----
    rows = jnp.arange(BtH)
    mask_up = (rows % H != 0).astype(jnp.float32).reshape(BtH, 1)       # zero at h==0
    mask_dn = (rows % H != H - 1).astype(jnp.float32).reshape(BtH, 1)   # zero at h==H-1
    sel = (rows[None, :] // H == jnp.arange(Bt)[:, None]).astype(jnp.float32)  # (Bt, BtH)

    # Free views: fold C into the batch and split into G row tiles.
    x_rows = x.reshape(G, BtH, W)

    # NOTE: the weight operands (gmat/cb_row/pw/lb/sel/masks) are grid-invariant;
    # at W=16 their default double-buffering is negligible (review item kept as a
    # TODO for large W, where gmat is O(W^2*hidden)).
    out = pl.pallas_call(
        _spectral_kernel,
        out_shape=jax.ShapeDtypeStruct((G, Bt, n_classes), jnp.float32),
        grid_spec=pltpu.PrefetchScalarGridSpec(
            num_scalar_prefetch=0,
            grid=(G,),
            in_specs=[
                pl.BlockSpec((1, BtH, W), lambda i: (i, 0, 0)),
                pl.BlockSpec(gmat.shape, lambda i: (0, 0)),
                pl.BlockSpec(cb_row.shape, lambda i: (0, 0)),
                pl.BlockSpec(pw.shape, lambda i: (0, 0)),
                pl.BlockSpec(lb.shape, lambda i: (0, 0)),
                pl.BlockSpec(sel.shape, lambda i: (0, 0)),
                pl.BlockSpec(mask_up.shape, lambda i: (0, 0)),
                pl.BlockSpec(mask_dn.shape, lambda i: (0, 0)),
            ],
            out_specs=pl.BlockSpec((1, Bt, n_classes), lambda i: (i, 0, 0)),
        ),
        compiler_params=pltpu.CompilerParams(
            dimension_semantics=("parallel",)),
    )(x_rows, gmat, cb_row, pw, lb, sel, mask_up, mask_dn)

    return out.reshape(N, C, n_classes)   # zero-copy: flat batch index = n*C + c


def reference(x, conv_w9, conv_b, lin_w, lin_b):
    """Pure-JAX replica of the PyTorch forward (per-channel loop)."""
    N, C, H, W = x.shape
    hidden = conv_w9.shape[-1]
    # (9, hidden) -> OIHW (hidden, 1, 3, 3), cross-correlation like nn.Conv2d.
    wk = conv_w9.reshape(3, 3, hidden).transpose(2, 0, 1)[:, None, :, :]
    outs = []
    for c in range(C):
        xc = x[:, c:c + 1]                                   # (N, 1, H, W)
        conv = jax.lax.conv_general_dilated(
            xc, wk, window_strides=(1, 1), padding="SAME",
            dimension_numbers=("NCHW", "OIHW", "NCHW"))
        conv = conv + conv_b.reshape(1, hidden, 1, 1)
        conv = jnp.maximum(conv, 0.0)
        pooled = jnp.mean(conv, axis=(2, 3))                 # (N, hidden)
        outs.append(pooled @ lin_w + lin_b[0])
    return jnp.stack(outs, axis=1)                           # (N, C, n_classes)


if __name__ == "__main__":
    N, C, H, W = 2, 4, 16, 16
    hidden, n_classes = 32, 8

    key = jax.random.PRNGKey(0)
    k1, k2, k3, k4, k5 = jax.random.split(key, 5)
    x = jax.random.normal(k1, (N, C, H, W), jnp.float32)
    conv_w = 0.1 * jax.random.normal(k2, (9, hidden), jnp.float32)       # 3x3, 1 in-ch
    conv_b = 0.1 * jax.random.normal(k3, (1, hidden), jnp.float32)
    lin_w = 0.1 * jax.random.normal(k4, (hidden, n_classes), jnp.float32)
    lin_b = 0.1 * jax.random.normal(k5, (1, n_classes), jnp.float32)

    out = jax.block_until_ready(
        spectral_analysis_forward(x, conv_w, conv_b, lin_w, lin_b))
    ref = reference(x, conv_w, conv_b, lin_w, lin_b)

    assert out.shape == (N, C, n_classes), out.shape
    assert jnp.allclose(out, ref, atol=1e-4, rtol=1e-4), \
        float(jnp.max(jnp.abs(out - ref)))
    print("KERNEL_OK")
</pallas_src>

<mosaic_0001>
module attributes {stable_mosaic.version = 11 : i64} {
  func.func @_spectral_kernel(%arg0: i32, %arg1: memref<1x128x16xf32, #tpu.memory_space<vmem>>, %arg2: memref<48x512xf32, #tpu.memory_space<vmem>>, %arg3: memref<1x512xf32, #tpu.memory_space<vmem>>, %arg4: memref<512x8xf32, #tpu.memory_space<vmem>>, %arg5: memref<1x8xf32, #tpu.memory_space<vmem>>, %arg6: memref<8x128xf32, #tpu.memory_space<vmem>>, %arg7: memref<128x1xf32, #tpu.memory_space<vmem>>, %arg8: memref<128x1xf32, #tpu.memory_space<vmem>>, %arg9: memref<1x8x8xf32, #tpu.memory_space<vmem>>) attributes {dimension_semantics = [#tpu.dimension_semantics<parallel>], iteration_bounds = array<i64: 1>, scalar_prefetch = 0 : i64, scratch_operands = 0 : i64, tpu.core_type = #tpu.core_type<tc>, window_params = [{transform_indices = @transform_0, window_bounds = array<i64: 1, 128, 16>}, {pipeline_mode = #tpu.pipeline_mode<synchronous>, transform_indices = @transform_1, window_bounds = array<i64: 48, 512>}, {pipeline_mode = #tpu.pipeline_mode<synchronous>, transform_indices = @transform_2, window_bounds = array<i64: 1, 512>}, {pipeline_mode = #tpu.pipeline_mode<synchronous>, transform_indices = @transform_3, window_bounds = array<i64: 512, 8>}, {pipeline_mode = #tpu.pipeline_mode<synchronous>, transform_indices = @transform_4, window_bounds = array<i64: 1, 8>}, {pipeline_mode = #tpu.pipeline_mode<synchronous>, transform_indices = @transform_5, window_bounds = array<i64: 8, 128>}, {pipeline_mode = #tpu.pipeline_mode<synchronous>, transform_indices = @transform_6, window_bounds = array<i64: 128, 1>}, {pipeline_mode = #tpu.pipeline_mode<synchronous>, transform_indices = @transform_7, window_bounds = array<i64: 128, 1>}, {transform_indices = @transform_8, window_bounds = array<i64: 1, 8, 8>}]} {
    %c0 = arith.constant 0 : index
    %c0_0 = arith.constant 0 : index
    %c0_1 = arith.constant 0 : index
    %0 = vector.load %arg1[%c0, %c0_0, %c0_1] : memref<1x128x16xf32, #tpu.memory_space<vmem>>, vector<1x128x16xf32>
    %1 = vector.shape_cast %0 : vector<1x128x16xf32> to vector<128x16xf32>
    %c1_i32 = arith.constant 1 : i32
    %2 = tpu.dynamic_rotate %1 by %c1_i32 dim 0 : vector<128x16xf32>, i32 -> vector<128x16xf32>
    %c0_2 = arith.constant 0 : index
    %c0_3 = arith.constant 0 : index
    %3 = vector.load %arg7[%c0_2, %c0_3] : memref<128x1xf32, #tpu.memory_space<vmem>>, vector<128x1xf32>
    %4 = vector.broadcast %3 : vector<128x1xf32> to vector<128x16xf32>
    %5 = arith.mulf %2, %4 : vector<128x16xf32>
    %c127_i32 = arith.constant 127 : i32
    %6 = tpu.dynamic_rotate %1 by %c127_i32 dim 0 : vector<128x16xf32>, i32 -> vector<128x16xf32>
    %c0_4 = arith.constant 0 : index
    %c0_5 = arith.constant 0 : index
    %7 = vector.load %arg8[%c0_4, %c0_5] : memref<128x1xf32, #tpu.memory_space<vmem>>, vector<128x1xf32>
    %8 = vector.broadcast %7 : vector<128x1xf32> to vector<128x16xf32>
    %9 = arith.mulf %6, %8 : vector<128x16xf32>
    %10 = tpu.concatenate %5, %1, %9 in 1 : vector<128x16xf32>, vector<128x16xf32>, vector<128x16xf32> -> vector<128x48xf32>
    %c0_6 = arith.constant 0 : index
    %c0_7 = arith.constant 0 : index
    %11 = vector.load %arg2[%c0_6, %c0_7] : memref<48x512xf32, #tpu.memory_space<vmem>>, vector<48x512xf32>
    %cst = arith.constant dense<0.000000e+00> : vector<128x512xf32>
    %12 = tpu.matmul %10, %11, %cst {dimension_numbers = #tpu.dot_dimension_numbers<[1], [0], [0], [1], [0, 0, 1, 1], [], []>} : vector<128x48xf32>, vector<48x512xf32>, vector<128x512xf32> -> vector<128x512xf32>
    %c0_8 = arith.constant 0 : index
    %c0_9 = arith.constant 0 : index
    %13 = vector.load %arg3[%c0_8, %c0_9] : memref<1x512xf32, #tpu.memory_space<vmem>>, vector<1x512xf32>
    %14 = vector.shape_cast %13 : vector<1x512xf32> to vector<512xf32>
    %15 = vector.shape_cast %14 : vector<512xf32> to vector<1x512xf32>
    %16 = vector.broadcast %15 : vector<1x512xf32> to vector<128x512xf32>
    %17 = arith.addf %12, %16 : vector<128x512xf32>
    %cst_10 = arith.constant 0.000000e+00 : f32
    %18 = vector.broadcast %cst_10 : f32 to vector<128x512xf32>
    %19 = arith.maximumf %17, %18 : vector<128x512xf32>
    %c0_11 = arith.constant 0 : index
    %c0_12 = arith.constant 0 : index
    %20 = vector.load %arg4[%c0_11, %c0_12] : memref<512x8xf32, #tpu.memory_space<vmem>>, vector<512x8xf32>
    %cst_13 = arith.constant dense<0.000000e+00> : vector<128x8xf32>
    %21 = tpu.matmul %19, %20, %cst_13 {dimension_numbers = #tpu.dot_dimension_numbers<[1], [0], [0], [1], [0, 0, 1, 1], [], []>} : vector<128x512xf32>, vector<512x8xf32>, vector<128x8xf32> -> vector<128x8xf32>
    %c0_14 = arith.constant 0 : index
    %c0_15 = arith.constant 0 : index
    %22 = vector.load %arg6[%c0_14, %c0_15] : memref<8x128xf32, #tpu.memory_space<vmem>>, vector<8x128xf32>
    %cst_16 = arith.constant dense<0.000000e+00> : vector<8x8xf32>
    %23 = tpu.matmul %22, %21, %cst_16 {dimension_numbers = #tpu.dot_dimension_numbers<[1], [0], [0], [1], [0, 0, 1, 1], [], []>} : vector<8x128xf32>, vector<128x8xf32>, vector<8x8xf32> -> vector<8x8xf32>
    %c0_17 = arith.constant 0 : index
    %c0_18 = arith.constant 0 : index
    %24 = vector.load %arg5[%c0_17, %c0_18] : memref<1x8xf32, #tpu.memory_space<vmem>>, vector<1x8xf32>
    %25 = vector.shape_cast %24 : vector<1x8xf32> to vector<8xf32>
    %26 = vector.shape_cast %25 : vector<8xf32> to vector<1x8xf32>
    %27 = vector.broadcast %26 : vector<1x8xf32> to vector<8x8xf32>
    %28 = arith.addf %23, %27 : vector<8x8xf32>
    %c0_19 = arith.constant 0 : index
    %c0_20 = arith.constant 0 : index
    %c0_21 = arith.constant 0 : index
    %29 = vector.load %arg9[%c0_19, %c0_20, %c0_21] : memref<1x8x8xf32, #tpu.memory_space<vmem>>, vector<1x8x8xf32>
    %30 = vector.shape_cast %29 : vector<1x8x8xf32> to vector<8x8xf32>
    %31 = vector.shape_cast %28 : vector<8x8xf32> to vector<1x8x8xf32>
    tpu.vector_store %arg9[%c0_19, %c0_20, %c0_21], %31 {strides = array<i32>} : memref<1x8x8xf32, #tpu.memory_space<vmem>>, vector<1x8x8xf32>,
    return
  }
  func.func @transform_0(%arg0: i32) -> (i32, i32, i32) {
    %c0_i32 = arith.constant 0 : i32
    %c0_i32_0 = arith.constant 0 : i32
    %c0_i32_1 = arith.constant 0 : i32
    return %arg0, %c0_i32, %c0_i32_0 : i32, i32, i32
  }
  func.func @transform_1(%arg0: i32) -> (i32, i32) {
    %c0_i32 = arith.constant 0 : i32
    %c0_i32_0 = arith.constant 0 : i32
    %c0_i32_1 = arith.constant 0 : i32
    return %c0_i32, %c0_i32_0 : i32, i32
  }
  func.func @transform_2(%arg0: i32) -> (i32, i32) {
    %c0_i32 = arith.constant 0 : i32
    %c0_i32_0 = arith.constant 0 : i32
    %c0_i32_1 = arith.constant 0 : i32
    return %c0_i32, %c0_i32_0 : i32, i32
  }
  func.func @transform_3(%arg0: i32) -> (i32, i32) {
    %c0_i32 = arith.constant 0 : i32
    %c0_i32_0 = arith.constant 0 : i32
    %c0_i32_1 = arith.constant 0 : i32
    return %c0_i32, %c0_i32_0 : i32, i32
  }
  func.func @transform_4(%arg0: i32) -> (i32, i32) {
    %c0_i32 = arith.constant 0 : i32
    %c0_i32_0 = arith.constant 0 : i32
    %c0_i32_1 = arith.constant 0 : i32
    return %c0_i32, %c0_i32_0 : i32, i32
  }
  func.func @transform_5(%arg0: i32) -> (i32, i32) {
    %c0_i32 = arith.constant 0 : i32
    %c0_i32_0 = arith.constant 0 : i32
    %c0_i32_1 = arith.constant 0 : i32
    return %c0_i32, %c0_i32_0 : i32, i32
  }
  func.func @transform_6(%arg0: i32) -> (i32, i32) {
    %c0_i32 = arith.constant 0 : i32
    %c0_i32_0 = arith.constant 0 : i32
    %c0_i32_1 = arith.constant 0 : i32
    return %c0_i32, %c0_i32_0 : i32, i32
  }
  func.func @transform_7(%arg0: i32) -> (i32, i32) {
    %c0_i32 = arith.constant 0 : i32
    %c0_i32_0 = arith.constant 0 : i32
    %c0_i32_1 = arith.constant 0 : i32
    return %c0_i32, %c0_i32_0 : i32, i32
  }
  func.func @transform_8(%arg0: i32) -> (i32, i32, i32) {
    %c0_i32 = arith.constant 0 : i32
    %c0_i32_0 = arith.constant 0 : i32
    %c0_i32_1 = arith.constant 0 : i32
    return %arg0, %c0_i32, %c0_i32_0 : i32, i32, i32
  }
}

</mosaic_0001>

<llo_original>
// kernel: tpu_custom_call.1
$region0: #{tpu_custom_call.1}
  #allocation0 [shape = 'u32[]', space=smem, size = 0x4, offset = 0x4, fixed_abs, tag = 'smem constant byte address 0x4 - core index']
  #allocation1 [shape = 'u32[144,128]{1,0:T(1,128)}', space=vmem, size = 0x12000, scoped, tag = 'internal scratch']
  %s0 = inlined_call_operand.vmem [shape: f32[1,128,16], index: 0, kind: input, shape index: {}]
  %s1 = inlined_call_operand.vmem [shape: f32[48,512], index: 1, kind: input, shape index: {}]
  %s2 = inlined_call_operand.vmem [shape: f32[1,512], index: 2, kind: input, shape index: {}]
  %s3 = inlined_call_operand.vmem [shape: f32[512,8], index: 3, kind: input, shape index: {}]
  %s4 = inlined_call_operand.vmem [shape: f32[1,8], index: 4, kind: input, shape index: {}]
  %s5 = inlined_call_operand.vmem [shape: f32[8,128], index: 5, kind: input, shape index: {}]
  %s6 = inlined_call_operand.vmem [shape: f32[128,1], index: 6, kind: input, shape index: {}]
  %s7 = inlined_call_operand.vmem [shape: f32[128,1], index: 7, kind: input, shape index: {}]
  %s8 = inlined_call_operand.hbm [shape: f32[1,8,8], index: 8, kind: output, shape index: {}]
  %s9 = sld [smem:[#allocation0]]
  $region42: #{tpu_custom_call.1} parent=0
    _
  %s11 = ssub.s32 1, %s9
  %s12 = scalar_select 0, %s11, %s9
  $region1: #{tpu_custom_call.1} parent=0
    #allocation2 [shape = 'u8[4096]{0}', space=vmem, size = 0x1000, scoped, tag = 'output window, operand 0, single buffered']
    #allocation3 [shape = 's32[1]{0}', space=sflag, size = 0x4, scoped, tag = 'scoped memory for tpu_custom_call.1']
    %13 = vsyncpa [#allocation3], 0
    // Predicated region
    $region2: #{tpu_custom_call.1} parent=1 // pred_check
      _
    $region3: #{tpu_custom_call.1} parent=1 // pred_check_branch
      %15 = sbr.rel (0) target = $region5
    $region4: #{tpu_custom_call.1} parent=1 // pred_region
      _
    $region5: #{tpu_custom_call.1} parent=1 // pred_fallthru
      _
    // Predicated region
    $region6: #{tpu_custom_call.1} parent=1 // pred_check
      _
    $region7: #{tpu_custom_call.1} parent=1 // pred_check_branch
      %17 = sbr.rel (0) target = $region9
    $region8: #{tpu_custom_call.1} parent=1 // pred_region
      _
    $region9: #{tpu_custom_call.1} parent=1 // pred_fallthru
      _
    // Predicated region
    $region10: #{tpu_custom_call.1} parent=1 // pred_check
      _
    $region11: #{tpu_custom_call.1} parent=1 // pred_check_branch
      %19 = sbr.rel (0) target = $region13
    $region12: #{tpu_custom_call.1} parent=1 // pred_region
      _
    $region13: #{tpu_custom_call.1} parent=1 // pred_fallthru
      _
    // Predicated region
    $region14: #{tpu_custom_call.1} parent=1 // pred_check
      _
    $region15: #{tpu_custom_call.1} parent=1 // pred_check_branch
      %21 = sbr.rel (0) target = $region17
    $region16: #{tpu_custom_call.1} parent=1 // pred_region
      _
    $region17: #{tpu_custom_call.1} parent=1 // pred_fallthru
      _
    // Predicated region
    $region18: #{tpu_custom_call.1} parent=1 // pred_check
      _
    $region19: #{tpu_custom_call.1} parent=1 // pred_check_branch
      %23 = sbr.rel (0) target = $region21
    $region20: #{tpu_custom_call.1} parent=1 // pred_region
      _
    $region21: #{tpu_custom_call.1} parent=1 // pred_fallthru
      _
    // Predicated region
    $region22: #{tpu_custom_call.1} parent=1 // pred_check
      _
    $region23: #{tpu_custom_call.1} parent=1 // pred_check_branch
      %25 = sbr.rel (0) target = $region25
    $region24: #{tpu_custom_call.1} parent=1 // pred_region
      _
    $region25: #{tpu_custom_call.1} parent=1 // pred_fallthru
      _
    // Predicated region
    $region26: #{tpu_custom_call.1} parent=1 // pred_check
      _
    $region27: #{tpu_custom_call.1} parent=1 // pred_check_branch
      %27 = sbr.rel (0) target = $region29
    $region28: #{tpu_custom_call.1} parent=1 // pred_region
      _
    $region29: #{tpu_custom_call.1} parent=1 // pred_fallthru
      _
    // Predicated region
    $region30: #{tpu_custom_call.1} parent=1 // pred_check
      _
    $region31: #{tpu_custom_call.1} parent=1 // pred_check_branch
      %29 = sbr.rel (0) target = $region33
    $region32: #{tpu_custom_call.1} parent=1 // pred_region
      _
    $region33: #{tpu_custom_call.1} parent=1 // pred_fallthru
      _
    %v30 = vld [vmem:[%s0] sm:$0xff]
    %v31 = vld [vmem:[%s0 + $0x8] sm:$0xff]
    %v32 = vld [vmem:[%s0 + $0x10] sm:$0xff]
    %v33 = vld [vmem:[%s0 + $0x18] sm:$0xff]
    %v34 = vld [vmem:[%s0 + $0x20] sm:$0xff]
    %v35 = vld [vmem:[%s0 + $0x28] sm:$0xff]
    %v36 = vld [vmem:[%s0 + $0x30] sm:$0xff]
    %v37 = vld [vmem:[%s0 + $0x38] sm:$0xff]
    %v38 = vld [vmem:[%s0 + $0x40] sm:$0xff]
    %v39 = vld [vmem:[%s0 + $0x48] sm:$0xff]
    %v40 = vld [vmem:[%s0 + $0x50] sm:$0xff]
    %v41 = vld [vmem:[%s0 + $0x58] sm:$0xff]
    %v42 = vld [vmem:[%s0 + $0x60] sm:$0xff]
    %v43 = vld [vmem:[%s0 + $0x68] sm:$0xff]
    %v44 = vld [vmem:[%s0 + $0x70] sm:$0xff]
    %v45 = vld [vmem:[%s0 + $0x78] sm:$0xff]
    %v46 = vrot.slane %v30, 7
    %v47 = vrot.slane %v31, 7
    %v48 = vrot.slane %v32, 7
    %v49 = vrot.slane %v33, 7
    %v50 = vrot.slane %v34, 7
    %v51 = vrot.slane %v35, 7
    %v52 = vrot.slane %v36, 7
    %v53 = vrot.slane %v37, 7
    %v54 = vrot.slane %v38, 7
    %v55 = vrot.slane %v39, 7
    %v56 = vrot.slane %v40, 7
    %v57 = vrot.slane %v41, 7
    %v58 = vrot.slane %v42, 7
    %v59 = vrot.slane %v43, 7
    %v60 = vrot.slane %v44, 7
    %v61 = vrot.slane %v45, 7
    %v62 = vlaneseq
    %v63 = vshrl.u32 %v62, 7
    %vm64 = vcmp.lt.s32.totalorder %v63, 1
    %v65 = vsel %vm64, %v60, %v61
    %v66 = vsel %vm64, %v59, %v60
    %v67 = vsel %vm64, %v58, %v59
    %v68 = vsel %vm64, %v57, %v58
    %v69 = vsel %vm64, %v56, %v57
    %v70 = vsel %vm64, %v55, %v56
    %v71 = vsel %vm64, %v54, %v55
    %v72 = vsel %vm64, %v53, %v54
    %v73 = vsel %vm64, %v52, %v53
    %v74 = vsel %vm64, %v51, %v52
    %v75 = vsel %vm64, %v50, %v51
    %v76 = vsel %vm64, %v49, %v50
    %v77 = vsel %vm64, %v48, %v49
    %v78 = vsel %vm64, %v47, %v48
    %v79 = vsel %vm64, %v46, %v47
    %v80 = vsel %vm64, %v61, %v46
    %v81 = vld [vmem:[%s6] sm:$0xff]
    %v82 = vld [vmem:[%s6 + $0x8] sm:$0xff]
    %v83 = vld [vmem:[%s6 + $0x10] sm:$0xff]
    %v84 = vld [vmem:[%s6 + $0x18] sm:$0xff]
    %v85 = vld [vmem:[%s6 + $0x20] sm:$0xff]
    %v86 = vld [vmem:[%s6 + $0x28] sm:$0xff]
    %v87 = vld [vmem:[%s6 + $0x30] sm:$0xff]
    %v88 = vld [vmem:[%s6 + $0x38] sm:$0xff]
    %v89 = vld [vmem:[%s6 + $0x40] sm:$0xff]
    %v90 = vld [vmem:[%s6 + $0x48] sm:$0xff]
    %v91 = vld [vmem:[%s6 + $0x50] sm:$0xff]
    %v92 = vld [vmem:[%s6 + $0x58] sm:$0xff]
    %v93 = vld [vmem:[%s6 + $0x60] sm:$0xff]
    %v94 = vld [vmem:[%s6 + $0x68] sm:$0xff]
    %v95 = vld [vmem:[%s6 + $0x70] sm:$0xff]
    %v96 = vld [vmem:[%s6 + $0x78] sm:$0xff]
    %98 = vset.pattern.permute.xlu0 0
    %99 = vperm.xlu0 %98, %v81
    %v100 = vpop.permute.xlu0 %99
    %103 = vset.pattern.permute.xlu0 0
    %104 = vperm.xlu0 %103, %v82
    %v105 = vpop.permute.xlu0 %104
    %108 = vset.pattern.permute.xlu0 0
    %109 = vperm.xlu0 %108, %v83
    %v110 = vpop.permute.xlu0 %109
    %113 = vset.pattern.permute.xlu0 0
    %114 = vperm.xlu0 %113, %v84
    %v115 = vpop.permute.xlu0 %114
    %118 = vset.pattern.permute.xlu0 0
    %119 = vperm.xlu0 %118, %v85
    %v120 = vpop.permute.xlu0 %119
    %123 = vset.pattern.permute.xlu0 0
    %124 = vperm.xlu0 %123, %v86
    %v125 = vpop.permute.xlu0 %124
    %128 = vset.pattern.permute.xlu0 0
    %129 = vperm.xlu0 %128, %v87
    %v130 = vpop.permute.xlu0 %129
    %133 = vset.pattern.permute.xlu0 0
    %134 = vperm.xlu0 %133, %v88
    %v135 = vpop.permute.xlu0 %134
    %138 = vset.pattern.permute.xlu0 0
    %139 = vperm.xlu0 %138, %v89
    %v140 = vpop.permute.xlu0 %139
    %143 = vset.pattern.permute.xlu0 0
    %144 = vperm.xlu0 %143, %v90
    %v145 = vpop.permute.xlu0 %144
    %148 = vset.pattern.permute.xlu0 0
    %149 = vperm.xlu0 %148, %v91
    %v150 = vpop.permute.xlu0 %149
    %153 = vset.pattern.permute.xlu0 0
    %154 = vperm.xlu0 %153, %v92
    %v155 = vpop.permute.xlu0 %154
    %158 = vset.pattern.permute.xlu0 0
    %159 = vperm.xlu0 %158, %v93
    %v160 = vpop.permute.xlu0 %159
    %163 = vset.pattern.permute.xlu0 0
    %164 = vperm.xlu0 %163, %v94
    %v165 = vpop.permute.xlu0 %164
    %168 = vset.pattern.permute.xlu0 0
    %169 = vperm.xlu0 %168, %v95
    %v170 = vpop.permute.xlu0 %169
    %173 = vset.pattern.permute.xlu0 0
    %174 = vperm.xlu0 %173, %v96
    %v175 = vpop.permute.xlu0 %174
    %v177 = vmul.f32 %v80, %v100
    %v178 = vmul.f32 %v79, %v105
    %v179 = vmul.f32 %v78, %v110
    %v180 = vmul.f32 %v77, %v115
    %v181 = vmul.f32 %v76, %v120
    %v182 = vmul.f32 %v75, %v125
    %v183 = vmul.f32 %v74, %v130
    %v184 = vmul.f32 %v73, %v135
    %v185 = vmul.f32 %v72, %v140
    %v186 = vmul.f32 %v71, %v145
    %v187 = vmul.f32 %v70, %v150
    %v188 = vmul.f32 %v69, %v155
    %v189 = vmul.f32 %v68, %v160
    %v190 = vmul.f32 %v67, %v165
    %v191 = vmul.f32 %v66, %v170
    %v192 = vmul.f32 %v65, %v175
    %v193 = vrot.slane %v30, 1
    %v194 = vrot.slane %v31, 1
    %v195 = vrot.slane %v32, 1
    %v196 = vrot.slane %v33, 1
    %v197 = vrot.slane %v34, 1
    %v198 = vrot.slane %v35, 1
    %v199 = vrot.slane %v36, 1
    %v200 = vrot.slane %v37, 1
    %v201 = vrot.slane %v38, 1
    %v202 = vrot.slane %v39, 1
    %v203 = vrot.slane %v40, 1
    %v204 = vrot.slane %v41, 1
    %v205 = vrot.slane %v42, 1
    %v206 = vrot.slane %v43, 1
    %v207 = vrot.slane %v44, 1
    %v208 = vrot.slane %v45, 1
    %vm209 = vcmp.lt.s32.totalorder %v63, 7
    %v210 = vsel %vm209, %v207, %v208
    %v211 = vsel %vm209, %v206, %v207
    %v212 = vsel %vm209, %v205, %v206
    %v213 = vsel %vm209, %v204, %v205
    %v214 = vsel %vm209, %v203, %v204
    %v215 = vsel %vm209, %v202, %v203
    %v216 = vsel %vm209, %v201, %v202
    %v217 = vsel %vm209, %v200, %v201
    %v218 = vsel %vm209, %v199, %v200
    %v219 = vsel %vm209, %v198, %v199
    %v220 = vsel %vm209, %v197, %v198
    %v221 = vsel %vm209, %v196, %v197
    %v222 = vsel %vm209, %v195, %v196
    %v223 = vsel %vm209, %v194, %v195
    %v224 = vsel %vm209, %v193, %v194
    %v225 = vsel %vm209, %v208, %v193
    %v226 = vld [vmem:[%s7] sm:$0xff]
    %v227 = vld [vmem:[%s7 + $0x8] sm:$0xff]
    %v228 = vld [vmem:[%s7 + $0x10] sm:$0xff]
    %v229 = vld [vmem:[%s7 + $0x18] sm:$0xff]
    %v230 = vld [vmem:[%s7 + $0x20] sm:$0xff]
    %v231 = vld [vmem:[%s7 + $0x28] sm:$0xff]
    %v232 = vld [vmem:[%s7 + $0x30] sm:$0xff]
    %v233 = vld [vmem:[%s7 + $0x38] sm:$0xff]
    %v234 = vld [vmem:[%s7 + $0x40] sm:$0xff]
    %v235 = vld [vmem:[%s7 + $0x48] sm:$0xff]
    %v236 = vld [vmem:[%s7 + $0x50] sm:$0xff]
    %v237 = vld [vmem:[%s7 + $0x58] sm:$0xff]
    %v238 = vld [vmem:[%s7 + $0x60] sm:$0xff]
    %v239 = vld [vmem:[%s7 + $0x68] sm:$0xff]
    %v240 = vld [vmem:[%s7 + $0x70] sm:$0xff]
    %v241 = vld [vmem:[%s7 + $0x78] sm:$0xff]
    %243 = vset.pattern.permute.xlu0 0
    %244 = vperm.xlu0 %243, %v226
    %v245 = vpop.permute.xlu0 %244
    %248 = vset.pattern.permute.xlu0 0
    %249 = vperm.xlu0 %248, %v227
    %v250 = vpop.permute.xlu0 %249
    %253 = vset.pattern.permute.xlu0 0
    %254 = vperm.xlu0 %253, %v228
    %v255 = vpop.permute.xlu0 %254
    %258 = vset.pattern.permute.xlu0 0
    %259 = vperm.xlu0 %258, %v229
    %v260 = vpop.permute.xlu0 %259
    %263 = vset.pattern.permute.xlu0 0
    %264 = vperm.xlu0 %263, %v230
    %v265 = vpop.permute.xlu0 %264
    %268 = vset.pattern.permute.xlu0 0
    %269 = vperm.xlu0 %268, %v231
    %v270 = vpop.permute.xlu0 %269
    %273 = vset.pattern.permute.xlu0 0
    %274 = vperm.xlu0 %273, %v232
    %v275 = vpop.permute.xlu0 %274
    %278 = vset.pattern.permute.xlu0 0
    %279 = vperm.xlu0 %278, %v233
    %v280 = vpop.permute.xlu0 %279
    %283 = vset.pattern.permute.xlu0 0
    %284 = vperm.xlu0 %283, %v234
    %v285 = vpop.permute.xlu0 %284
    %288 = vset.pattern.permute.xlu0 0
    %289 = vperm.xlu0 %288, %v235
    %v290 = vpop.permute.xlu0 %289
    %293 = vset.pattern.permute.xlu0 0
    %294 = vperm.xlu0 %293, %v236
    %v295 = vpop.permute.xlu0 %294
    %298 = vset.pattern.permute.xlu0 0
    %299 = vperm.xlu0 %298, %v237
    %v300 = vpop.permute.xlu0 %299
    %303 = vset.pattern.permute.xlu0 0
    %304 = vperm.xlu0 %303, %v238
    %v305 = vpop.permute.xlu0 %304
    %308 = vset.pattern.permute.xlu0 0
    %309 = vperm.xlu0 %308, %v239
    %v310 = vpop.permute.xlu0 %309
    %313 = vset.pattern.permute.xlu0 0
    %314 = vperm.xlu0 %313, %v240
    %v315 = vpop.permute.xlu0 %314
    %318 = vset.pattern.permute.xlu0 0
    %319 = vperm.xlu0 %318, %v241
    %v320 = vpop.permute.xlu0 %319
    %v322 = vmul.f32 %v224, %v245
    %v323 = vmul.f32 %v223, %v250
    %v324 = vmul.f32 %v222, %v255
    %v325 = vmul.f32 %v221, %v260
    %v326 = vmul.f32 %v220, %v265
    %v327 = vmul.f32 %v219, %v270
    %v328 = vmul.f32 %v218, %v275
    %v329 = vmul.f32 %v217, %v280
    %v330 = vmul.f32 %v216, %v285
    %v331 = vmul.f32 %v215, %v290
    %v332 = vmul.f32 %v214, %v295
    %v333 = vmul.f32 %v213, %v300
    %v334 = vmul.f32 %v212, %v305
    %v335 = vmul.f32 %v211, %v310
    %v336 = vmul.f32 %v210, %v315
    %v337 = vmul.f32 %v225, %v320
    %354 = vrot.lane.b32.xlu0 %v30, 16
    %v355 = vpop.permute.xlu0 %354
    %356 = vrot.lane.b32.xlu0 %v31, 16
    %v357 = vpop.permute.xlu0 %356
    %358 = vrot.lane.b32.xlu0 %v32, 16
    %v359 = vpop.permute.xlu0 %358
    %360 = vrot.lane.b32.xlu0 %v33, 16
    %v361 = vpop.permute.xlu0 %360
    %362 = vrot.lane.b32.xlu0 %v34, 16
    %v363 = vpop.permute.xlu0 %362
    %364 = vrot.lane.b32.xlu0 %v35, 16
    %v365 = vpop.permute.xlu0 %364
    %366 = vrot.lane.b32.xlu0 %v36, 16
    %v367 = vpop.permute.xlu0 %366
    %368 = vrot.lane.b32.xlu0 %v37, 16
    %v369 = vpop.permute.xlu0 %368
    %370 = vrot.lane.b32.xlu0 %v38, 16
    %v371 = vpop.permute.xlu0 %370
    %372 = vrot.lane.b32.xlu0 %v39, 16
    %v373 = vpop.permute.xlu0 %372
    %374 = vrot.lane.b32.xlu0 %v40, 16
    %v375 = vpop.permute.xlu0 %374
    %376 = vrot.lane.b32.xlu0 %v41, 16
    %v377 = vpop.permute.xlu0 %376
    %378 = vrot.lane.b32.xlu0 %v42, 16
    %v379 = vpop.permute.xlu0 %378
    %380 = vrot.lane.b32.xlu0 %v43, 16
    %v381 = vpop.permute.xlu0 %380
    %382 = vrot.lane.b32.xlu0 %v44, 16
    %v383 = vpop.permute.xlu0 %382
    %384 = vrot.lane.b32.xlu0 %v45, 16
    %v385 = vpop.permute.xlu0 %384
    %418 = vrot.lane.b32.xlu0 %v322, 32
    %v419 = vpop.permute.xlu0 %418
    %420 = vrot.lane.b32.xlu0 %v323, 32
    %v421 = vpop.permute.xlu0 %420
    %422 = vrot.lane.b32.xlu0 %v324, 32
    %v423 = vpop.permute.xlu0 %422
    %424 = vrot.lane.b32.xlu0 %v325, 32
    %v425 = vpop.permute.xlu0 %424
    %426 = vrot.lane.b32.xlu0 %v326, 32
    %v427 = vpop.permute.xlu0 %426
    %428 = vrot.lane.b32.xlu0 %v327, 32
    %v429 = vpop.permute.xlu0 %428
    %430 = vrot.lane.b32.xlu0 %v328, 32
    %v431 = vpop.permute.xlu0 %430
    %432 = vrot.lane.b32.xlu0 %v329, 32
    %v433 = vpop.permute.xlu0 %432
    %434 = vrot.lane.b32.xlu0 %v330, 32
    %v435 = vpop.permute.xlu0 %434
    %436 = vrot.lane.b32.xlu0 %v331, 32
    %v437 = vpop.permute.xlu0 %436
    %438 = vrot.lane.b32.xlu0 %v332, 32
    %v439 = vpop.permute.xlu0 %438
    %440 = vrot.lane.b32.xlu0 %v333, 32
    %v441 = vpop.permute.xlu0 %440
    %442 = vrot.lane.b32.xlu0 %v334, 32
    %v443 = vpop.permute.xlu0 %442
    %444 = vrot.lane.b32.xlu0 %v335, 32
    %v445 = vpop.permute.xlu0 %444
    %446 = vrot.lane.b32.xlu0 %v336, 32
    %v447 = vpop.permute.xlu0 %446
    %448 = vrot.lane.b32.xlu0 %v337, 32
    %v449 = vpop.permute.xlu0 %448
    %vm466 = vcmask 130048
    %v467 = vsel %vm466, %v177, %v355
    %v468 = vsel %vm466, %v178, %v357
    %v469 = vsel %vm466, %v179, %v359
    %v470 = vsel %vm466, %v180, %v361
    %v471 = vsel %vm466, %v181, %v363
    %v472 = vsel %vm466, %v182, %v365
    %v473 = vsel %vm466, %v183, %v367
    %v474 = vsel %vm466, %v184, %v369
    %v475 = vsel %vm466, %v185, %v371
    %v476 = vsel %vm466, %v186, %v373
    %v477 = vsel %vm466, %v187, %v375
    %v478 = vsel %vm466, %v188, %v377
    %v479 = vsel %vm466, %v189, %v379
    %v480 = vsel %vm466, %v190, %v381
    %v481 = vsel %vm466, %v191, %v383
    %v482 = vsel %vm466, %v192, %v385
    %vm483 = vcmask 261120
    %v484 = vsel %vm483, %v467, %v419
    %v485 = vsel %vm483, %v468, %v421
    %v486 = vsel %vm483, %v469, %v423
    %v487 = vsel %vm483, %v470, %v425
    %v488 = vsel %vm483, %v471, %v427
    %v489 = vsel %vm483, %v472, %v429
    %v490 = vsel %vm483, %v473, %v431
    %v491 = vsel %vm483, %v474, %v433
    %v492 = vsel %vm483, %v475, %v435
    %v493 = vsel %vm483, %v476, %v437
    %v494 = vsel %vm483, %v477, %v439
    %v495 = vsel %vm483, %v478, %v441
    %v496 = vsel %vm483, %v479, %v443
    %v497 = vsel %vm483, %v480, %v445
    %v498 = vsel %vm483, %v481, %v447
    %v499 = vsel %vm483, %v482, %v449
    %v500 = vld [vmem:[%s1] sm:$0xff]
    %v501 = vld [vmem:[%s1 + $0x8] sm:$0xff]
    %v502 = vld [vmem:[%s1 + $0x10] sm:$0xff]
    %v503 = vld [vmem:[%s1 + $0x18] sm:$0xff]
    %v504 = vld [vmem:[%s1 + $0x20] sm:$0xff]
    %v505 = vld [vmem:[%s1 + $0x28] sm:$0xff]
    %v506 = vld [vmem:[%s1 + $0x30] sm:$0xff]
    %v507 = vld [vmem:[%s1 + $0x38] sm:$0xff]
    %v508 = vld [vmem:[%s1 + $0x40] sm:$0xff]
    %v509 = vld [vmem:[%s1 + $0x48] sm:$0xff]
    %v510 = vld [vmem:[%s1 + $0x50] sm:$0xff]
    %v511 = vld [vmem:[%s1 + $0x58] sm:$0xff]
    %v512 = vld [vmem:[%s1 + $0x60] sm:$0xff]
    %v513 = vld [vmem:[%s1 + $0x68] sm:$0xff]
    %v514 = vld [vmem:[%s1 + $0x70] sm:$0xff]
    %v515 = vld [vmem:[%s1 + $0x78] sm:$0xff]
    %v516 = vld [vmem:[%s1 + $0x80] sm:$0xff]
    %v517 = vld [vmem:[%s1 + $0x88] sm:$0xff]
    %v518 = vld [vmem:[%s1 + $0x90] sm:$0xff]
    %v519 = vld [vmem:[%s1 + $0x98] sm:$0xff]
    %v520 = vld [vmem:[%s1 + $0xa0] sm:$0xff]
    %v521 = vld [vmem:[%s1 + $0xa8] sm:$0xff]
    %v522 = vld [vmem:[%s1 + $0xb0] sm:$0xff]
    %v523 = vld [vmem:[%s1 + $0xb8] sm:$0xff]
    %v524 = vld [vmem:[%s2] sm:$0xf]
    %v526 = vlaneseq
    %v527 = vshrl.u32 %v526, 7
    %v528 = vsub.s32 0, %v527
    %v529 = vrot.slane %v524, %v528
    %v530 = vlaneseq
    %v531 = vshrl.u32 %v530, 7
    %v532 = vsub.s32 1, %v531
    %v533 = vrot.slane %v524, %v532
    %v534 = vlaneseq
    %v535 = vshrl.u32 %v534, 7
    %v536 = vsub.s32 2, %v535
    %v537 = vrot.slane %v524, %v536
    %v538 = vlaneseq
    %v539 = vshrl.u32 %v538, 7
    %v540 = vsub.s32 3, %v539
    %v541 = vrot.slane %v524, %v540
    %vm546 = vcmask 392192
    %v548 = vsel %vm546, %v484, 0
    %v551 = vsel %vm546, %v485, 0
    %v554 = vsel %vm546, %v486, 0
    %v557 = vsel %vm546, %v487, 0
    %v560 = vsel %vm546, %v488, 0
    %v563 = vsel %vm546, %v489, 0
    %v566 = vsel %vm546, %v490, 0
    %v569 = vsel %vm546, %v491, 0
    %v572 = vsel %vm546, %v492, 0
    %v575 = vsel %vm546, %v493, 0
    %v578 = vsel %vm546, %v494, 0
    %v581 = vsel %vm546, %v495, 0
    %v584 = vsel %vm546, %v496, 0
    %v587 = vsel %vm546, %v497, 0
    %v590 = vsel %vm546, %v498, 0
    %v593 = vsel %vm546, %v499, 0
    %595 = vmatprep.subr.mxu0 0.0
    %596 = vmatpush1.msra.mxu0 0.0
    %597 = vmatprep.subr.mxu0 0.0
    %598 = vmatpush1.msra.mxu0 0.0
    %599 = vmatprep.subr.mxu0 0.0
    %600 = vmatpush1.msra.mxu0 0.0
    %601 = vmatprep.subr.mxu0 0.0
    %602 = vmatpush1.msra.mxu0 0.0
    %603 = vmatprep.subr.mxu0 0.0
    %604 = vmatpush1.msra.mxu0 0.0
    %605 = vmatprep.subr.mxu0 0.0
    %606 = vmatpush1.msra.mxu0 0.0
    %607 = vmatprep.subr.mxu0 0.0
    %608 = vmatpush1.msra.mxu0 0.0
    %609 = vmatprep.subr.mxu0 0.0
    %610 = vmatpush1.msra.mxu0 0.0
    %611 = vmatprep.subr.mxu0 0.0
    %612 = vmatpush1.msra.mxu0 0.0
    %613 = vmatprep.subr.mxu0 0.0
    %614 = vmatpush1.msra.mxu0 0.0
    %615 = vmatprep.subr.mxu0 %v521
    %616 = vmatpush1.msra.mxu0 %v520
    %617 = vmatprep.subr.mxu0 %v517
    %618 = vmatpush1.msra.mxu0 %v516
    %619 = vmatprep.subr.mxu0 %v513
    %620 = vmatpush1.msra.mxu0 %v512
    %621 = vmatprep.subr.mxu0 %v509
    %622 = vmatpush1.msra.mxu0 %v508
    %623 = vmatprep.subr.mxu0 %v505
    %624 = vmatpush1.msra.mxu0 %v504
    %625 = vmatprep.subr.mxu0 %v501
    %626 = vmatpush1.msra.mxu0 %v500
    %627 = vmatprep.subr.mxu0 0.0
    %628 = vmatpush2.msra.mxu0 0.0
    %629 = vmatprep.subr.mxu0 0.0
    %630 = vmatpush2.msra.mxu0 0.0
    %631 = vmatprep.subr.mxu0 0.0
    %632 = vmatpush2.msra.mxu0 0.0
    %633 = vmatprep.subr.mxu0 0.0
    %634 = vmatpush2.msra.mxu0 0.0
    %635 = vmatprep.subr.mxu0 0.0
    %636 = vmatpush2.msra.mxu0 0.0
    %637 = vmatprep.subr.mxu0 0.0
    %638 = vmatpush2.msra.mxu0 0.0
    %639 = vmatprep.subr.mxu0 0.0
    %640 = vmatpush2.msra.mxu0 0.0
    %641 = vmatprep.subr.mxu0 0.0
    %642 = vmatpush2.msra.mxu0 0.0
    %643 = vmatprep.subr.mxu0 0.0
    %644 = vmatpush2.msra.mxu0 0.0
    %645 = vmatprep.subr.mxu0 0.0
    %646 = vmatpush2.msra.mxu0 0.0
    %647 = vmatprep.subr.mxu0 0.0
    %648 = vmatpush2.msra.mxu0 0.0
    %649 = vmatprep.subr.mxu0 0.0
    %650 = vmatpush2.msra.mxu0 0.0
    %651 = vmatprep.subr.mxu0 0.0
    %652 = vmatpush2.msra.mxu0 0.0
    %653 = vmatprep.subr.mxu0 0.0
    %654 = vmatpush2.msra.mxu0 0.0
    %655 = vmatprep.subr.mxu0 0.0
    %656 = vmatpush2.msra.mxu0 0.0
    %657 = vmatprep.subr.mxu0 0.0
    %658 = vmatpush2.msra.mxu0 0.0
    %659 = vmatprep.mubr.f32.mxu0 0.0
    %660 = vmatmul.mubr.f32.gmra.mxu0 %v548
    %v661 = vpop.f32.mrf.mxu0
    %v662 = vadd.f32 %v529, %v661
    %v663 = vpop.f32.mrf.mxu0
    %v664 = vadd.f32 %v533, %v663
    %665 = vmatprep.mubr.f32.mxu0 0.0
    %666 = vmatmul.mubr.f32.gmra.mxu0 %v551
    %v667 = vpop.f32.mrf.mxu0
    %v668 = vadd.f32 %v529, %v667
    %v669 = vpop.f32.mrf.mxu0
    %v670 = vadd.f32 %v533, %v669
    %671 = vmatprep.mubr.f32.mxu0 0.0
    %672 = vmatmul.mubr.f32.gmra.mxu0 %v554
    %v673 = vpop.f32.mrf.mxu0
    %v674 = vadd.f32 %v529, %v673
    %v675 = vpop.f32.mrf.mxu0
    %v676 = vadd.f32 %v533, %v675
    %677 = vmatprep.mubr.f32.mxu0 0.0
    %678 = vmatmul.mubr.f32.gmra.mxu0 %v557
    %v679 = vpop.f32.mrf.mxu0
    %v680 = vadd.f32 %v529, %v679
    %v681 = vpop.f32.mrf.mxu0
    %v682 = vadd.f32 %v533, %v681
    %683 = vmatprep.mubr.f32.mxu0 0.0
    %684 = vmatmul.mubr.f32.gmra.mxu0 %v560
    %v685 = vpop.f32.mrf.mxu0
    %v686 = vadd.f32 %v529, %v685
    %v687 = vpop.f32.mrf.mxu0
    %v688 = vadd.f32 %v533, %v687
    %689 = vmatprep.mubr.f32.mxu0 0.0
    %690 = vmatmul.mubr.f32.gmra.mxu0 %v563
    %v691 = vpop.f32.mrf.mxu0
    %v692 = vadd.f32 %v529, %v691
    %v693 = vpop.f32.mrf.mxu0
    %v694 = vadd.f32 %v533, %v693
    %695 = vmatprep.mubr.f32.mxu0 0.0
    %696 = vmatmul.mubr.f32.gmra.mxu0 %v566
    %v697 = vpop.f32.mrf.mxu0
    %v698 = vadd.f32 %v529, %v697
    %v699 = vpop.f32.mrf.mxu0
    %v700 = vadd.f32 %v533, %v699
    %701 = vmatprep.mubr.f32.mxu0 0.0
    %702 = vmatmul.mubr.f32.gmra.mxu0 %v569
    %v703 = vpop.f32.mrf.mxu0
    %v704 = vadd.f32 %v529, %v703
    %v705 = vpop.f32.mrf.mxu0
    %v706 = vadd.f32 %v533, %v705
    %707 = vmatprep.mubr.f32.mxu0 0.0
    %708 = vmatmul.mubr.f32.gmra.mxu0 %v572
    %v709 = vpop.f32.mrf.mxu0
    %v710 = vadd.f32 %v529, %v709
    %v711 = vpop.f32.mrf.mxu0
    %v712 = vadd.f32 %v533, %v711
    %713 = vmatprep.mubr.f32.mxu0 0.0
    %714 = vmatmul.mubr.f32.gmra.mxu0 %v575
    %v715 = vpop.f32.mrf.mxu0
    %v716 = vadd.f32 %v529, %v715
    %v717 = vpop.f32.mrf.mxu0
    %v718 = vadd.f32 %v533, %v717
    %719 = vmatprep.mubr.f32.mxu0 0.0
    %720 = vmatmul.mubr.f32.gmra.mxu0 %v578
    %v721 = vpop.f32.mrf.mxu0
    %v722 = vadd.f32 %v529, %v721
    %v723 = vpop.f32.mrf.mxu0
    %v724 = vadd.f32 %v533, %v723
    %725 = vmatprep.mubr.f32.mxu0 0.0
    %726 = vmatmul.mubr.f32.gmra.mxu0 %v581
    %v727 = vpop.f32.mrf.mxu0
    %v728 = vadd.f32 %v529, %v727
    %v729 = vpop.f32.mrf.mxu0
    %v730 = vadd.f32 %v533, %v729
    %731 = vmatprep.mubr.f32.mxu0 0.0
    %732 = vmatmul.mubr.f32.gmra.mxu0 %v584
    %v733 = vpop.f32.mrf.mxu0
    %v734 = vadd.f32 %v529, %v733
    %v735 = vpop.f32.mrf.mxu0
    %v736 = vadd.f32 %v533, %v735
    %737 = vmatprep.mubr.f32.mxu0 0.0
    %738 = vmatmul.mubr.f32.gmra.mxu0 %v587
    %v739 = vpop.f32.mrf.mxu0
    %v740 = vadd.f32 %v529, %v739
    %v741 = vpop.f32.mrf.mxu0
    %v742 = vadd.f32 %v533, %v741
    %743 = vmatprep.mubr.f32.mxu0 0.0
    %744 = vmatmul.mubr.f32.gmra.mxu0 %v590
    %v745 = vpop.f32.mrf.mxu0
    %v746 = vadd.f32 %v529, %v745
    %v747 = vpop.f32.mrf.mxu0
    %v748 = vadd.f32 %v533, %v747
    %749 = vmatprep.mubr.f32.mxu0 0.0
    %750 = vmatmul.mubr.f32.gmra.mxu0 %v593
    %v751 = vpop.f32.mrf.mxu0
    %v752 = vadd.f32 %v529, %v751
    %v753 = vpop.f32.mrf.mxu0
    %v754 = vadd.f32 %v533, %v753
    %755 = vdwg.mxu0
    %756 = vmatprep.subr.mxu0 0.0
    %757 = vmatpush1.msra.mxu0 0.0
    %758 = vmatprep.subr.mxu0 0.0
    %759 = vmatpush1.msra.mxu0 0.0
    %760 = vmatprep.subr.mxu0 0.0
    %761 = vmatpush1.msra.mxu0 0.0
    %762 = vmatprep.subr.mxu0 0.0
    %763 = vmatpush1.msra.mxu0 0.0
    %764 = vmatprep.subr.mxu0 0.0
    %765 = vmatpush1.msra.mxu0 0.0
    %766 = vmatprep.subr.mxu0 0.0
    %767 = vmatpush1.msra.mxu0 0.0
    %768 = vmatprep.subr.mxu0 0.0
    %769 = vmatpush1.msra.mxu0 0.0
    %770 = vmatprep.subr.mxu0 0.0
    %771 = vmatpush1.msra.mxu0 0.0
    %772 = vmatprep.subr.mxu0 0.0
    %773 = vmatpush1.msra.mxu0 0.0
    %774 = vmatprep.subr.mxu0 0.0
    %775 = vmatpush1.msra.mxu0 0.0
    %776 = vmatprep.subr.mxu0 %v523
    %777 = vmatpush1.msra.mxu0 %v522
    %778 = vmatprep.subr.mxu0 %v519
    %779 = vmatpush1.msra.mxu0 %v518
    %780 = vmatprep.subr.mxu0 %v515
    %781 = vmatpush1.msra.mxu0 %v514
    %782 = vmatprep.subr.mxu0 %v511
    %783 = vmatpush1.msra.mxu0 %v510
    %784 = vmatprep.subr.mxu0 %v507
    %785 = vmatpush1.msra.mxu0 %v506
    %786 = vmatprep.subr.mxu0 %v503
    %787 = vmatpush1.msra.mxu0 %v502
    %788 = vmatprep.subr.mxu0 0.0
    %789 = vmatpush2.msra.mxu0 0.0
    %790 = vmatprep.subr.mxu0 0.0
    %791 = vmatpush2.msra.mxu0 0.0
    %792 = vmatprep.subr.mxu0 0.0
    %793 = vmatpush2.msra.mxu0 0.0
    %794 = vmatprep.subr.mxu0 0.0
    %795 = vmatpush2.msra.mxu0 0.0
    %796 = vmatprep.subr.mxu0 0.0
    %797 = vmatpush2.msra.mxu0 0.0
    %798 = vmatprep.subr.mxu0 0.0
    %799 = vmatpush2.msra.mxu0 0.0
    %800 = vmatprep.subr.mxu0 0.0
    %801 = vmatpush2.msra.mxu0 0.0
    %802 = vmatprep.subr.mxu0 0.0
    %803 = vmatpush2.msra.mxu0 0.0
    %804 = vmatprep.subr.mxu0 0.0
    %805 = vmatpush2.msra.mxu0 0.0
    %806 = vmatprep.subr.mxu0 0.0
    %807 = vmatpush2.msra.mxu0 0.0
    %808 = vmatprep.subr.mxu0 0.0
    %809 = vmatpush2.msra.mxu0 0.0
    %810 = vmatprep.subr.mxu0 0.0
    %811 = vmatpush2.msra.mxu0 0.0
    %812 = vmatprep.subr.mxu0 0.0
    %813 = vmatpush2.msra.mxu0 0.0
    %814 = vmatprep.subr.mxu0 0.0
    %815 = vmatpush2.msra.mxu0 0.0
    %816 = vmatprep.subr.mxu0 0.0
    %817 = vmatpush2.msra.mxu0 0.0
    %818 = vmatprep.subr.mxu0 0.0
    %819 = vmatpush2.msra.mxu0 0.0
    %820 = vmatprep.mubr.f32.mxu0 0.0
    %821 = vmatmul.mubr.f32.gmra.mxu0 %v548
    %v822 = vpop.f32.mrf.mxu0
    %v823 = vadd.f32 %v537, %v822
    %v824 = vpop.f32.mrf.mxu0
    %v825 = vadd.f32 %v541, %v824
    %826 = vmatprep.mubr.f32.mxu0 0.0
    %827 = vmatmul.mubr.f32.gmra.mxu0 %v551
    %v828 = vpop.f32.mrf.mxu0
    %v829 = vadd.f32 %v537, %v828
    %v830 = vpop.f32.mrf.mxu0
    %v831 = vadd.f32 %v541, %v830
    %832 = vmatprep.mubr.f32.mxu0 0.0
    %833 = vmatmul.mubr.f32.gmra.mxu0 %v554
    %v834 = vpop.f32.mrf.mxu0
    %v835 = vadd.f32 %v537, %v834
    %v836 = vpop.f32.mrf.mxu0
    %v837 = vadd.f32 %v541, %v836
    %838 = vmatprep.mubr.f32.mxu0 0.0
    %839 = vmatmul.mubr.f32.gmra.mxu0 %v557
    %v840 = vpop.f32.mrf.mxu0
    %v841 = vadd.f32 %v537, %v840
    %v842 = vpop.f32.mrf.mxu0
    %v843 = vadd.f32 %v541, %v842
    %844 = vmatprep.mubr.f32.mxu0 0.0
    %845 = vmatmul.mubr.f32.gmra.mxu0 %v560
    %v846 = vpop.f32.mrf.mxu0
    %v847 = vadd.f32 %v537, %v846
    %v848 = vpop.f32.mrf.mxu0
    %v849 = vadd.f32 %v541, %v848
    %850 = vmatprep.mubr.f32.mxu0 0.0
    %851 = vmatmul.mubr.f32.gmra.mxu0 %v563
    %v852 = vpop.f32.mrf.mxu0
    %v853 = vadd.f32 %v537, %v852
    %v854 = vpop.f32.mrf.mxu0
    %v855 = vadd.f32 %v541, %v854
    %856 = vmatprep.mubr.f32.mxu0 0.0
    %857 = vmatmul.mubr.f32.gmra.mxu0 %v566
    %v858 = vpop.f32.mrf.mxu0
    %v859 = vadd.f32 %v537, %v858
    %v860 = vpop.f32.mrf.mxu0
    %v861 = vadd.f32 %v541, %v860
    %862 = vmatprep.mubr.f32.mxu0 0.0
    %863 = vmatmul.mubr.f32.gmra.mxu0 %v569
    %v864 = vpop.f32.mrf.mxu0
    %v865 = vadd.f32 %v537, %v864
    %v866 = vpop.f32.mrf.mxu0
    %v867 = vadd.f32 %v541, %v866
    %868 = vmatprep.mubr.f32.mxu0 0.0
    %869 = vmatmul.mubr.f32.gmra.mxu0 %v572
    %v870 = vpop.f32.mrf.mxu0
    %v871 = vadd.f32 %v537, %v870
    %v872 = vpop.f32.mrf.mxu0
    %v873 = vadd.f32 %v541, %v872
    %874 = vmatprep.mubr.f32.mxu0 0.0
    %875 = vmatmul.mubr.f32.gmra.mxu0 %v575
    %v876 = vpop.f32.mrf.mxu0
    %v877 = vadd.f32 %v537, %v876
    %v878 = vpop.f32.mrf.mxu0
    %v879 = vadd.f32 %v541, %v878
    %880 = vmatprep.mubr.f32.mxu0 0.0
    %881 = vmatmul.mubr.f32.gmra.mxu0 %v578
    %v882 = vpop.f32.mrf.mxu0
    %v883 = vadd.f32 %v537, %v882
    %v884 = vpop.f32.mrf.mxu0
    %v885 = vadd.f32 %v541, %v884
    %886 = vmatprep.mubr.f32.mxu0 0.0
    %887 = vmatmul.mubr.f32.gmra.mxu0 %v581
    %v888 = vpop.f32.mrf.mxu0
    %v889 = vadd.f32 %v537, %v888
    %v890 = vpop.f32.mrf.mxu0
    %v891 = vadd.f32 %v541, %v890
    %892 = vmatprep.mubr.f32.mxu0 0.0
    %893 = vmatmul.mubr.f32.gmra.mxu0 %v584
    %v894 = vpop.f32.mrf.mxu0
    %v895 = vadd.f32 %v537, %v894
    %v896 = vpop.f32.mrf.mxu0
    %v897 = vadd.f32 %v541, %v896
    %898 = vmatprep.mubr.f32.mxu0 0.0
    %899 = vmatmul.mubr.f32.gmra.mxu0 %v587
    %v900 = vpop.f32.mrf.mxu0
    %v901 = vadd.f32 %v537, %v900
    %v902 = vpop.f32.mrf.mxu0
    %v903 = vadd.f32 %v541, %v902
    %904 = vmatprep.mubr.f32.mxu0 0.0
    %905 = vmatmul.mubr.f32.gmra.mxu0 %v590
    %v906 = vpop.f32.mrf.mxu0
    %v907 = vadd.f32 %v537, %v906
    %v908 = vpop.f32.mrf.mxu0
    %v909 = vadd.f32 %v541, %v908
    %910 = vmatprep.mubr.f32.mxu0 0.0
    %911 = vmatmul.mubr.f32.gmra.mxu0 %v593
    %v912 = vpop.f32.mrf.mxu0
    %v913 = vadd.f32 %v537, %v912
    %v914 = vpop.f32.mrf.mxu0
    %v915 = vadd.f32 %v541, %v914
    %916 = vdwg.mxu0
    %v917 = vmax.f32 %v662, 0.0
    %v918 = vmax.f32 %v664, 0.0
    %v919 = vmax.f32 %v823, 0.0
    %v920 = vmax.f32 %v825, 0.0
    %v921 = vmax.f32 %v668, 0.0
    %v922 = vmax.f32 %v670, 0.0
    %v923 = vmax.f32 %v829, 0.0
    %v924 = vmax.f32 %v831, 0.0
    %v925 = vmax.f32 %v674, 0.0
    %v926 = vmax.f32 %v676, 0.0
    %v927 = vmax.f32 %v835, 0.0
    %v928 = vmax.f32 %v837, 0.0
    %v929 = vmax.f32 %v680, 0.0
    %v930 = vmax.f32 %v682, 0.0
    %v931 = vmax.f32 %v841, 0.0
    %v932 = vmax.f32 %v843, 0.0
    %v933 = vmax.f32 %v686, 0.0
    %v934 = vmax.f32 %v688, 0.0
    %v935 = vmax.f32 %v847, 0.0
    %v936 = vmax.f32 %v849, 0.0
    %v937 = vmax.f32 %v692, 0.0
    %v938 = vmax.f32 %v694, 0.0
    %v939 = vmax.f32 %v853, 0.0
    %v940 = vmax.f32 %v855, 0.0
    %v941 = vmax.f32 %v698, 0.0
    %v942 = vmax.f32 %v700, 0.0
    %v943 = vmax.f32 %v859, 0.0
    %v944 = vmax.f32 %v861, 0.0
    %v945 = vmax.f32 %v704, 0.0
    %v946 = vmax.f32 %v706, 0.0
    %v947 = vmax.f32 %v865, 0.0
    %v948 = vmax.f32 %v867, 0.0
    %v949 = vmax.f32 %v710, 0.0
    %v950 = vmax.f32 %v712, 0.0
    %v951 = vmax.f32 %v871, 0.0
    %v952 = vmax.f32 %v873, 0.0
    %v953 = vmax.f32 %v716, 0.0
    %v954 = vmax.f32 %v718, 0.0
    %v955 = vmax.f32 %v877, 0.0
    %v956 = vmax.f32 %v879, 0.0
    %v957 = vmax.f32 %v722, 0.0
    %v958 = vmax.f32 %v724, 0.0
    %v959 = vmax.f32 %v883, 0.0
    %v960 = vmax.f32 %v885, 0.0
    %v961 = vmax.f32 %v728, 0.0
    %v962 = vmax.f32 %v730, 0.0
    %v963 = vmax.f32 %v889, 0.0
    %v964 = vmax.f32 %v891, 0.0
    %v965 = vmax.f32 %v734, 0.0
    %v966 = vmax.f32 %v736, 0.0
    %v967 = vmax.f32 %v895, 0.0
    %v968 = vmax.f32 %v897, 0.0
    %v969 = vmax.f32 %v740, 0.0
    %v970 = vmax.f32 %v742, 0.0
    %v971 = vmax.f32 %v901, 0.0
    %v972 = vmax.f32 %v903, 0.0
    %v973 = vmax.f32 %v746, 0.0
    %v974 = vmax.f32 %v748, 0.0
    %v975 = vmax.f32 %v907, 0.0
    %v976 = vmax.f32 %v909, 0.0
    %v977 = vmax.f32 %v752, 0.0
    %v978 = vmax.f32 %v754, 0.0
    %v979 = vmax.f32 %v913, 0.0
    %v980 = vmax.f32 %v915, 0.0
    %v981 = vld [vmem:[%s3] sm:$0xff]
    %v982 = vld [vmem:[%s3 + $0x8] sm:$0xff]
    %v983 = vld [vmem:[%s3 + $0x10] sm:$0xff]
    %v984 = vld [vmem:[%s3 + $0x18] sm:$0xff]
    %v985 = vld [vmem:[%s3 + $0x20] sm:$0xff]
    %v986 = vld [vmem:[%s3 + $0x28] sm:$0xff]
    %v987 = vld [vmem:[%s3 + $0x30] sm:$0xff]
    %v988 = vld [vmem:[%s3 + $0x38] sm:$0xff]
    %v989 = vld [vmem:[%s3 + $0x40] sm:$0xff]
    %v990 = vld [vmem:[%s3 + $0x48] sm:$0xff]
    %v991 = vld [vmem:[%s3 + $0x50] sm:$0xff]
    %v992 = vld [vmem:[%s3 + $0x58] sm:$0xff]
    %v993 = vld [vmem:[%s3 + $0x60] sm:$0xff]
    %v994 = vld [vmem:[%s3 + $0x68] sm:$0xff]
    %v995 = vld [vmem:[%s3 + $0x70] sm:$0xff]
    %v996 = vld [vmem:[%s3 + $0x78] sm:$0xff]
    %v997 = vld [vmem:[%s3 + $0x80] sm:$0xff]
    %v998 = vld [vmem:[%s3 + $0x88] sm:$0xff]
    %v999 = vld [vmem:[%s3 + $0x90] sm:$0xff]
    %v1000 = vld [vmem:[%s3 + $0x98] sm:$0xff]
    %v1001 = vld [vmem:[%s3 + $0xa0] sm:$0xff]
    %v1002 = vld [vmem:[%s3 + $0xa8] sm:$0xff]
    %v1003 = vld [vmem:[%s3 + $0xb0] sm:$0xff]
    %v1004 = vld [vmem:[%s3 + $0xb8] sm:$0xff]
    %v1005 = vld [vmem:[%s3 + $0xc0] sm:$0xff]
    %v1006 = vld [vmem:[%s3 + $0xc8] sm:$0xff]
    %v1007 = vld [vmem:[%s3 + $0xd0] sm:$0xff]
    %v1008 = vld [vmem:[%s3 + $0xd8] sm:$0xff]
    %v1009 = vld [vmem:[%s3 + $0xe0] sm:$0xff]
    %v1010 = vld [vmem:[%s3 + $0xe8] sm:$0xff]
    %v1011 = vld [vmem:[%s3 + $0xf0] sm:$0xff]
    %v1012 = vld [vmem:[%s3 + $0xf8] sm:$0xff]
    %v1013 = vld [vmem:[%s3 + $0x100] sm:$0xff]
    %v1014 = vld [vmem:[%s3 + $0x108] sm:$0xff]
    %v1015 = vld [vmem:[%s3 + $0x110] sm:$0xff]
    %v1016 = vld [vmem:[%s3 + $0x118] sm:$0xff]
    %v1017 = vld [vmem:[%s3 + $0x120] sm:$0xff]
    %v1018 = vld [vmem:[%s3 + $0x128] sm:$0xff]
    %v1019 = vld [vmem:[%s3 + $0x130] sm:$0xff]
    %v1020 = vld [vmem:[%s3 + $0x138] sm:$0xff]
    %v1021 = vld [vmem:[%s3 + $0x140] sm:$0xff]
    %v1022 = vld [vmem:[%s3 + $0x148] sm:$0xff]
    %v1023 = vld [vmem:[%s3 + $0x150] sm:$0xff]
    %v1024 = vld [vmem:[%s3 + $0x158] sm:$0xff]
    %v1025 = vld [vmem:[%s3 + $0x160] sm:$0xff]
    %v1026 = vld [vmem:[%s3 + $0x168] sm:$0xff]
    %v1027 = vld [vmem:[%s3 + $0x170] sm:$0xff]
    %v1028 = vld [vmem:[%s3 + $0x178] sm:$0xff]
    %v1029 = vld [vmem:[%s3 + $0x180] sm:$0xff]
    %v1030 = vld [vmem:[%s3 + $0x188] sm:$0xff]
    %v1031 = vld [vmem:[%s3 + $0x190] sm:$0xff]
    %v1032 = vld [vmem:[%s3 + $0x198] sm:$0xff]
    %v1033 = vld [vmem:[%s3 + $0x1a0] sm:$0xff]
    %v1034 = vld [vmem:[%s3 + $0x1a8] sm:$0xff]
    %v1035 = vld [vmem:[%s3 + $0x1b0] sm:$0xff]
    %v1036 = vld [vmem:[%s3 + $0x1b8] sm:$0xff]
    %v1037 = vld [vmem:[%s3 + $0x1c0] sm:$0xff]
    %v1038 = vld [vmem:[%s3 + $0x1c8] sm:$0xff]
    %v1039 = vld [vmem:[%s3 + $0x1d0] sm:$0xff]
    %v1040 = vld [vmem:[%s3 + $0x1d8] sm:$0xff]
    %v1041 = vld [vmem:[%s3 + $0x1e0] sm:$0xff]
    %v1042 = vld [vmem:[%s3 + $0x1e8] sm:$0xff]
    %v1043 = vld [vmem:[%s3 + $0x1f0] sm:$0xff]
    %v1044 = vld [vmem:[%s3 + $0x1f8] sm:$0xff]
    %1045 = vmatprep.subr.mxu0 0.0
    %1046 = vmatpush1.msra.mxu0 %v996
    %1047 = vmatprep.subr.mxu0 0.0
    %1048 = vmatpush1.msra.mxu0 %v995
    %1049 = vmatprep.subr.mxu0 0.0
    %1050 = vmatpush1.msra.mxu0 %v994
    %1051 = vmatprep.subr.mxu0 0.0
    %1052 = vmatpush1.msra.mxu0 %v993
    %1053 = vmatprep.subr.mxu0 0.0
    %1054 = vmatpush1.msra.mxu0 %v992
    %1055 = vmatprep.subr.mxu0 0.0
    %1056 = vmatpush1.msra.mxu0 %v991
    %1057 = vmatprep.subr.mxu0 0.0
    %1058 = vmatpush1.msra.mxu0 %v990
    %1059 = vmatprep.subr.mxu0 0.0
    %1060 = vmatpush1.msra.mxu0 %v989
    %1061 = vmatprep.subr.mxu0 0.0
    %1062 = vmatpush1.msra.mxu0 %v988
    %1063 = vmatprep.subr.mxu0 0.0
    %1064 = vmatpush1.msra.mxu0 %v987
    %1065 = vmatprep.subr.mxu0 0.0
    %1066 = vmatpush1.msra.mxu0 %v986
    %1067 = vmatprep.subr.mxu0 0.0
    %1068 = vmatpush1.msra.mxu0 %v985
    %1069 = vmatprep.subr.mxu0 0.0
    %1070 = vmatpush1.msra.mxu0 %v984
    %1071 = vmatprep.subr.mxu0 0.0
    %1072 = vmatpush1.msra.mxu0 %v983
    %1073 = vmatprep.subr.mxu0 0.0
    %1074 = vmatpush1.msra.mxu0 %v982
    %1075 = vmatprep.subr.mxu0 0.0
    %1076 = vmatpush1.msra.mxu0 %v981
    %1077 = vmatprep.subr.mxu0 0.0
    %1078 = vmatpush2.msra.mxu0 %v1012
    %1079 = vmatprep.subr.mxu0 0.0
    %1080 = vmatpush2.msra.mxu0 %v1011
    %1081 = vmatprep.subr.mxu0 0.0
    %1082 = vmatpush2.msra.mxu0 %v1010
    %1083 = vmatprep.subr.mxu0 0.0
    %1084 = vmatpush2.msra.mxu0 %v1009
    %1085 = vmatprep.subr.mxu0 0.0
    %1086 = vmatpush2.msra.mxu0 %v1008
    %1087 = vmatprep.subr.mxu0 0.0
    %1088 = vmatpush2.msra.mxu0 %v1007
    %1089 = vmatprep.subr.mxu0 0.0
    %1090 = vmatpush2.msra.mxu0 %v1006
    %1091 = vmatprep.subr.mxu0 0.0
    %1092 = vmatpush2.msra.mxu0 %v1005
    %1093 = vmatprep.subr.mxu0 0.0
    %1094 = vmatpush2.msra.mxu0 %v1004
    %1095 = vmatprep.subr.mxu0 0.0
    %1096 = vmatpush2.msra.mxu0 %v1003
    %1097 = vmatprep.subr.mxu0 0.0
    %1098 = vmatpush2.msra.mxu0 %v1002
    %1099 = vmatprep.subr.mxu0 0.0
    %1100 = vmatpush2.msra.mxu0 %v1001
    %1101 = vmatprep.subr.mxu0 0.0
    %1102 = vmatpush2.msra.mxu0 %v1000
    %1103 = vmatprep.subr.mxu0 0.0
    %1104 = vmatpush2.msra.mxu0 %v999
    %1105 = vmatprep.subr.mxu0 0.0
    %1106 = vmatpush2.msra.mxu0 %v998
    %1107 = vmatprep.subr.mxu0 0.0
    %1108 = vmatpush2.msra.mxu0 %v997
    %1109 = vmatprep.mubr.f32.mxu0 %v918
    %1110 = vmatmul.mubr.f32.gmra.mxu0 %v917
    %v1111 = vpop.f32.mrf.mxu0
    %v1112 = vadd.f32 0.0, %v1111
    %v1113 = vpop.f32.mrf.mxu0
    %1114 = vmatprep.mubr.f32.mxu0 %v922
    %1115 = vmatmul.mubr.f32.gmra.mxu0 %v921
    %v1116 = vpop.f32.mrf.mxu0
    %v1117 = vadd.f32 0.0, %v1116
    %v1118 = vpop.f32.mrf.mxu0
    %1119 = vmatprep.mubr.f32.mxu0 %v926
    %1120 = vmatmul.mubr.f32.gmra.mxu0 %v925
    %v1121 = vpop.f32.mrf.mxu0
    %v1122 = vadd.f32 0.0, %v1121
    %v1123 = vpop.f32.mrf.mxu0
    %1124 = vmatprep.mubr.f32.mxu0 %v930
    %1125 = vmatmul.mubr.f32.gmra.mxu0 %v929
    %v1126 = vpop.f32.mrf.mxu0
    %v1127 = vadd.f32 0.0, %v1126
    %v1128 = vpop.f32.mrf.mxu0
    %1129 = vmatprep.mubr.f32.mxu0 %v934
    %1130 = vmatmul.mubr.f32.gmra.mxu0 %v933
    %v1131 = vpop.f32.mrf.mxu0
    %v1132 = vadd.f32 0.0, %v1131
    %v1133 = vpop.f32.mrf.mxu0
    %1134 = vmatprep.mubr.f32.mxu0 %v938
    %1135 = vmatmul.mubr.f32.gmra.mxu0 %v937
    %v1136 = vpop.f32.mrf.mxu0
    %v1137 = vadd.f32 0.0, %v1136
    %v1138 = vpop.f32.mrf.mxu0
    %1139 = vmatprep.mubr.f32.mxu0 %v942
    %1140 = vmatmul.mubr.f32.gmra.mxu0 %v941
    %v1141 = vpop.f32.mrf.mxu0
    %v1142 = vadd.f32 0.0, %v1141
    %v1143 = vpop.f32.mrf.mxu0
    %1144 = vmatprep.mubr.f32.mxu0 %v946
    %1145 = vmatmul.mubr.f32.gmra.mxu0 %v945
    %v1146 = vpop.f32.mrf.mxu0
    %v1147 = vadd.f32 0.0, %v1146
    %v1148 = vpop.f32.mrf.mxu0
    %1149 = vmatprep.mubr.f32.mxu0 %v950
    %1150 = vmatmul.mubr.f32.gmra.mxu0 %v949
    %v1151 = vpop.f32.mrf.mxu0
    %v1152 = vadd.f32 0.0, %v1151
    %v1153 = vpop.f32.mrf.mxu0
    %1154 = vmatprep.mubr.f32.mxu0 %v954
    %1155 = vmatmul.mubr.f32.gmra.mxu0 %v953
    %v1156 = vpop.f32.mrf.mxu0
    %v1157 = vadd.f32 0.0, %v1156
    %v1158 = vpop.f32.mrf.mxu0
    %1159 = vmatprep.mubr.f32.mxu0 %v958
    %1160 = vmatmul.mubr.f32.gmra.mxu0 %v957
    %v1161 = vpop.f32.mrf.mxu0
    %v1162 = vadd.f32 0.0, %v1161
    %v1163 = vpop.f32.mrf.mxu0
    %1164 = vmatprep.mubr.f32.mxu0 %v962
    %1165 = vmatmul.mubr.f32.gmra.mxu0 %v961
    %v1166 = vpop.f32.mrf.mxu0
    %v1167 = vadd.f32 0.0, %v1166
    %v1168 = vpop.f32.mrf.mxu0
    %1169 = vmatprep.mubr.f32.mxu0 %v966
    %1170 = vmatmul.mubr.f32.gmra.mxu0 %v965
    %v1171 = vpop.f32.mrf.mxu0
    %v1172 = vadd.f32 0.0, %v1171
    %v1173 = vpop.f32.mrf.mxu0
    %1174 = vmatprep.mubr.f32.mxu0 %v970
    %1175 = vmatmul.mubr.f32.gmra.mxu0 %v969
    %v1176 = vpop.f32.mrf.mxu0
    %v1177 = vadd.f32 0.0, %v1176
    %v1178 = vpop.f32.mrf.mxu0
    %1179 = vmatprep.mubr.f32.mxu0 %v974
    %1180 = vmatmul.mubr.f32.gmra.mxu0 %v973
    %v1181 = vpop.f32.mrf.mxu0
    %v1182 = vadd.f32 0.0, %v1181
    %v1183 = vpop.f32.mrf.mxu0
    %1184 = vmatprep.mubr.f32.mxu0 %v978
    %1185 = vmatmul.mubr.f32.gmra.mxu0 %v977
    %v1186 = vpop.f32.mrf.mxu0
    %v1187 = vadd.f32 0.0, %v1186
    %v1188 = vpop.f32.mrf.mxu0
    %1189 = vdwg.mxu0
    %1190 = vmatprep.subr.mxu0 0.0
    %1191 = vmatpush1.msra.mxu0 %v1028
    %1192 = vmatprep.subr.mxu0 0.0
    %1193 = vmatpush1.msra.mxu0 %v1027
    %1194 = vmatprep.subr.mxu0 0.0
    %1195 = vmatpush1.msra.mxu0 %v1026
    %1196 = vmatprep.subr.mxu0 0.0
    %1197 = vmatpush1.msra.mxu0 %v1025
    %1198 = vmatprep.subr.mxu0 0.0
    %1199 = vmatpush1.msra.mxu0 %v1024
    %1200 = vmatprep.subr.mxu0 0.0
    %1201 = vmatpush1.msra.mxu0 %v1023
    %1202 = vmatprep.subr.mxu0 0.0
    %1203 = vmatpush1.msra.mxu0 %v1022
    %1204 = vmatprep.subr.mxu0 0.0
    %1205 = vmatpush1.msra.mxu0 %v1021
    %1206 = vmatprep.subr.mxu0 0.0
    %1207 = vmatpush1.msra.mxu0 %v1020
    %1208 = vmatprep.subr.mxu0 0.0
    %1209 = vmatpush1.msra.mxu0 %v1019
    %1210 = vmatprep.subr.mxu0 0.0
    %1211 = vmatpush1.msra.mxu0 %v1018
    %1212 = vmatprep.subr.mxu0 0.0
    %1213 = vmatpush1.msra.mxu0 %v1017
    %1214 = vmatprep.subr.mxu0 0.0
    %1215 = vmatpush1.msra.mxu0 %v1016
    %1216 = vmatprep.subr.mxu0 0.0
    %1217 = vmatpush1.msra.mxu0 %v1015
    %1218 = vmatprep.subr.mxu0 0.0
    %1219 = vmatpush1.msra.mxu0 %v1014
    %1220 = vmatprep.subr.mxu0 0.0
    %1221 = vmatpush1.msra.mxu0 %v1013
    %1222 = vmatprep.subr.mxu0 0.0
    %1223 = vmatpush2.msra.mxu0 %v1044
    %1224 = vmatprep.subr.mxu0 0.0
    %1225 = vmatpush2.msra.mxu0 %v1043
    %1226 = vmatprep.subr.mxu0 0.0
    %1227 = vmatpush2.msra.mxu0 %v1042
    %1228 = vmatprep.subr.mxu0 0.0
    %1229 = vmatpush2.msra.mxu0 %v1041
    %1230 = vmatprep.subr.mxu0 0.0
    %1231 = vmatpush2.msra.mxu0 %v1040
    %1232 = vmatprep.subr.mxu0 0.0
    %1233 = vmatpush2.msra.mxu0 %v1039
    %1234 = vmatprep.subr.mxu0 0.0
    %1235 = vmatpush2.msra.mxu0 %v1038
    %1236 = vmatprep.subr.mxu0 0.0
    %1237 = vmatpush2.msra.mxu0 %v1037
    %1238 = vmatprep.subr.mxu0 0.0
    %1239 = vmatpush2.msra.mxu0 %v1036
    %1240 = vmatprep.subr.mxu0 0.0
    %1241 = vmatpush2.msra.mxu0 %v1035
    %1242 = vmatprep.subr.mxu0 0.0
    %1243 = vmatpush2.msra.mxu0 %v1034
    %1244 = vmatprep.subr.mxu0 0.0
    %1245 = vmatpush2.msra.mxu0 %v1033
    %1246 = vmatprep.subr.mxu0 0.0
    %1247 = vmatpush2.msra.mxu0 %v1032
    %1248 = vmatprep.subr.mxu0 0.0
    %1249 = vmatpush2.msra.mxu0 %v1031
    %1250 = vmatprep.subr.mxu0 0.0
    %1251 = vmatpush2.msra.mxu0 %v1030
    %1252 = vmatprep.subr.mxu0 0.0
    %1253 = vmatpush2.msra.mxu0 %v1029
    %1254 = vmatprep.mubr.f32.mxu0 %v920
    %1255 = vmatmul.mubr.f32.gmra.mxu0 %v919
    %v1256 = vpop.f32.mrf.mxu0
    %v1257 = vadd.f32 %v1112, %v1256
    %v1258 = vpop.f32.mrf.mxu0
    %1259 = vmatprep.mubr.f32.mxu0 %v924
    %1260 = vmatmul.mubr.f32.gmra.mxu0 %v923
    %v1261 = vpop.f32.mrf.mxu0
    %v1262 = vadd.f32 %v1117, %v1261
    %v1263 = vpop.f32.mrf.mxu0
    %1264 = vmatprep.mubr.f32.mxu0 %v928
    %1265 = vmatmul.mubr.f32.gmra.mxu0 %v927
    %v1266 = vpop.f32.mrf.mxu0
    %v1267 = vadd.f32 %v1122, %v1266
    %v1268 = vpop.f32.mrf.mxu0
    %1269 = vmatprep.mubr.f32.mxu0 %v932
    %1270 = vmatmul.mubr.f32.gmra.mxu0 %v931
    %v1271 = vpop.f32.mrf.mxu0
    %v1272 = vadd.f32 %v1127, %v1271
    %v1273 = vpop.f32.mrf.mxu0
    %1274 = vmatprep.mubr.f32.mxu0 %v936
    %1275 = vmatmul.mubr.f32.gmra.mxu0 %v935
    %v1276 = vpop.f32.mrf.mxu0
    %v1277 = vadd.f32 %v1132, %v1276
    %v1278 = vpop.f32.mrf.mxu0
    %1279 = vmatprep.mubr.f32.mxu0 %v940
    %1280 = vmatmul.mubr.f32.gmra.mxu0 %v939
    %v1281 = vpop.f32.mrf.mxu0
    %v1282 = vadd.f32 %v1137, %v1281
    %v1283 = vpop.f32.mrf.mxu0
    %1284 = vmatprep.mubr.f32.mxu0 %v944
    %1285 = vmatmul.mubr.f32.gmra.mxu0 %v943
    %v1286 = vpop.f32.mrf.mxu0
    %v1287 = vadd.f32 %v1142, %v1286
    %v1288 = vpop.f32.mrf.mxu0
    %1289 = vmatprep.mubr.f32.mxu0 %v948
    %1290 = vmatmul.mubr.f32.gmra.mxu0 %v947
    %v1291 = vpop.f32.mrf.mxu0
    %v1292 = vadd.f32 %v1147, %v1291
    %v1293 = vpop.f32.mrf.mxu0
    %1294 = vmatprep.mubr.f32.mxu0 %v952
    %1295 = vmatmul.mubr.f32.gmra.mxu0 %v951
    %v1296 = vpop.f32.mrf.mxu0
    %v1297 = vadd.f32 %v1152, %v1296
    %v1298 = vpop.f32.mrf.mxu0
    %1299 = vmatprep.mubr.f32.mxu0 %v956
    %1300 = vmatmul.mubr.f32.gmra.mxu0 %v955
    %v1301 = vpop.f32.mrf.mxu0
    %v1302 = vadd.f32 %v1157, %v1301
    %v1303 = vpop.f32.mrf.mxu0
    %1304 = vmatprep.mubr.f32.mxu0 %v960
    %1305 = vmatmul.mubr.f32.gmra.mxu0 %v959
    %v1306 = vpop.f32.mrf.mxu0
    %v1307 = vadd.f32 %v1162, %v1306
    %v1308 = vpop.f32.mrf.mxu0
    %1309 = vmatprep.mubr.f32.mxu0 %v964
    %1310 = vmatmul.mubr.f32.gmra.mxu0 %v963
    %v1311 = vpop.f32.mrf.mxu0
    %v1312 = vadd.f32 %v1167, %v1311
    %v1313 = vpop.f32.mrf.mxu0
    %1314 = vmatprep.mubr.f32.mxu0 %v968
    %1315 = vmatmul.mubr.f32.gmra.mxu0 %v967
    %v1316 = vpop.f32.mrf.mxu0
    %v1317 = vadd.f32 %v1172, %v1316
    %v1318 = vpop.f32.mrf.mxu0
    %1319 = vmatprep.mubr.f32.mxu0 %v972
    %1320 = vmatmul.mubr.f32.gmra.mxu0 %v971
    %v1321 = vpop.f32.mrf.mxu0
    %v1322 = vadd.f32 %v1177, %v1321
    %v1323 = vpop.f32.mrf.mxu0
    %1324 = vmatprep.mubr.f32.mxu0 %v976
    %1325 = vmatmul.mubr.f32.gmra.mxu0 %v975
    %v1326 = vpop.f32.mrf.mxu0
    %v1327 = vadd.f32 %v1182, %v1326
    %v1328 = vpop.f32.mrf.mxu0
    %1329 = vmatprep.mubr.f32.mxu0 %v980
    %1330 = vmatmul.mubr.f32.gmra.mxu0 %v979
    %v1331 = vpop.f32.mrf.mxu0
    %v1332 = vadd.f32 %v1187, %v1331
    %v1333 = vpop.f32.mrf.mxu0
    %1334 = vdwg.mxu0
    %v1335 = vld [vmem:[%s5] sm:$0xff]
    %v1336 = vld [vmem:[%s4] sm:$0x1]
    %v1338 = vlaneseq
    %v1339 = vshrl.u32 %v1338, 7
    %v1340 = vsub.s32 0, %v1339
    %v1341 = vrot.slane %v1336, %v1340
    %1343 = vmatprep.subr.mxu0 0.0
    %1344 = vmatpush1.msra.mxu0 %v1332
    %1345 = vmatprep.subr.mxu0 0.0
    %1346 = vmatpush1.msra.mxu0 %v1327
    %1347 = vmatprep.subr.mxu0 0.0
    %1348 = vmatpush1.msra.mxu0 %v1322
    %1349 = vmatprep.subr.mxu0 0.0
    %1350 = vmatpush1.msra.mxu0 %v1317
    %1351 = vmatprep.subr.mxu0 0.0
    %1352 = vmatpush1.msra.mxu0 %v1312
    %1353 = vmatprep.subr.mxu0 0.0
    %1354 = vmatpush1.msra.mxu0 %v1307
    %1355 = vmatprep.subr.mxu0 0.0
    %1356 = vmatpush1.msra.mxu0 %v1302
    %1357 = vmatprep.subr.mxu0 0.0
    %1358 = vmatpush1.msra.mxu0 %v1297
    %1359 = vmatprep.subr.mxu0 0.0
    %1360 = vmatpush1.msra.mxu0 %v1292
    %1361 = vmatprep.subr.mxu0 0.0
    %1362 = vmatpush1.msra.mxu0 %v1287
    %1363 = vmatprep.subr.mxu0 0.0
    %1364 = vmatpush1.msra.mxu0 %v1282
    %1365 = vmatprep.subr.mxu0 0.0
    %1366 = vmatpush1.msra.mxu0 %v1277
    %1367 = vmatprep.subr.mxu0 0.0
    %1368 = vmatpush1.msra.mxu0 %v1272
    %1369 = vmatprep.subr.mxu0 0.0
    %1370 = vmatpush1.msra.mxu0 %v1267
    %1371 = vmatprep.subr.mxu0 0.0
    %1372 = vmatpush1.msra.mxu0 %v1262
    %1373 = vmatprep.subr.mxu0 0.0
    %1374 = vmatpush1.msra.mxu0 %v1257
    %1375 = vmatprep.subr.mxu0 0.0
    %1376 = vmatpush2.msra.mxu0 0.0
    %1377 = vmatprep.subr.mxu0 0.0
    %1378 = vmatpush2.msra.mxu0 0.0
    %1379 = vmatprep.subr.mxu0 0.0
    %1380 = vmatpush2.msra.mxu0 0.0
    %1381 = vmatprep.subr.mxu0 0.0
    %1382 = vmatpush2.msra.mxu0 0.0
    %1383 = vmatprep.subr.mxu0 0.0
    %1384 = vmatpush2.msra.mxu0 0.0
    %1385 = vmatprep.subr.mxu0 0.0
    %1386 = vmatpush2.msra.mxu0 0.0
    %1387 = vmatprep.subr.mxu0 0.0
    %1388 = vmatpush2.msra.mxu0 0.0
    %1389 = vmatprep.subr.mxu0 0.0
    %1390 = vmatpush2.msra.mxu0 0.0
    %1391 = vmatprep.subr.mxu0 0.0
    %1392 = vmatpush2.msra.mxu0 0.0
    %1393 = vmatprep.subr.mxu0 0.0
    %1394 = vmatpush2.msra.mxu0 0.0
    %1395 = vmatprep.subr.mxu0 0.0
    %1396 = vmatpush2.msra.mxu0 0.0
    %1397 = vmatprep.subr.mxu0 0.0
    %1398 = vmatpush2.msra.mxu0 0.0
    %1399 = vmatprep.subr.mxu0 0.0
    %1400 = vmatpush2.msra.mxu0 0.0
    %1401 = vmatprep.subr.mxu0 0.0
    %1402 = vmatpush2.msra.mxu0 0.0
    %1403 = vmatprep.subr.mxu0 0.0
    %1404 = vmatpush2.msra.mxu0 0.0
    %1405 = vmatprep.subr.mxu0 0.0
    %1406 = vmatpush2.msra.mxu0 0.0
    %1407 = vmatprep.mubr.f32.mxu0 0.0
    %1408 = vmatmul.mubr.f32.gmra.mxu0 %v1335
    %v1409 = vpop.f32.mrf.mxu0
    %v1410 = vadd.f32 %v1341, %v1409
    %v1411 = vpop.f32.mrf.mxu0
    %1412 = vdwg.mxu0
    %vm1413 = vcmask 64512
    %1414 = vst.msk [vmem:[#allocation2] sm:$0xff] %vm1413, %v1410
    // Predicated region
    $region34: #{tpu_custom_call.1} parent=1 // pred_check
      _
    $region35: #{tpu_custom_call.1} parent=1 // pred_check_branch
      %1416 = sbr.rel (0) target = $region37
    $region36: #{tpu_custom_call.1} parent=1 // pred_region
      %s1418 = ssub.s32 128, 128
      %1419 = vsyncadd [#allocation3], %s1418
      %s1421 = sshll.u32 [#allocation2], 4
      %s1422 = int_to_ptr.vmem [resolvable:$true] %s1421
      %1424 = dma.vmem_to_hbm [thread:$0]  %s1422, 128, %s8, [#allocation3]
    $region37: #{tpu_custom_call.1} parent=1 // pred_fallthru
      _
    // Predicated region
    $region38: #{tpu_custom_call.1} parent=1 // pred_check
      _
    $region39: #{tpu_custom_call.1} parent=1 // pred_check_branch
      %1426 = sbr.rel (0) target = $region41
    $region40: #{tpu_custom_call.1} parent=1 // pred_region
      %1427 = dma.done [#allocation3], 128
    $region41: #{tpu_custom_call.1} parent=1 // pred_fallthru
      _
    %1428 = vsyncpa [#allocation3], 1

</llo_original>
